<compile_context>
chip_gen: v7x
topology: tpu7x:2x2x1
jax: 0.10.0
libtpu: 0.0.40
codegen_flags: <defaults>
</compile_context>

<pallas_src>
import functools

import jax
import jax.numpy as jnp
from jax.experimental import pallas as pl
from jax.experimental.pallas import tpu as pltpu


# --------------------------------------------------------------------------- #
# Kernels
# --------------------------------------------------------------------------- #
def _se_fused_kernel(x_ref, w1t_ref, w2t_ref, o_ref):
    # x_ref  : (Bt, C, HW)   Bt batch elements per grid step
    # w1t_ref: (C, C_red)    pre-transposed nn.Linear(C, C_red).weight
    # w2t_ref: (C_red, C)    pre-transposed nn.Linear(C_red, C).weight
    hw = x_ref.shape[-1]

    # Squeeze: global average pool over the spatial (lane) axis, f32 accumulation.
    # The cast is fused per-vreg into the reduction; no full-slab f32 temp is kept.
    y = jnp.sum(x_ref[...].astype(jnp.float32), axis=-1) * (1.0 / float(hw))  # (Bt, C)

    # Excitation: two tiny MXU matmuls (weights used in their native dtype).
    h = jnp.maximum(jnp.dot(y, w1t_ref[...], preferred_element_type=jnp.float32), 0.0)
    s = jax.nn.sigmoid(jnp.dot(h, w2t_ref[...], preferred_element_type=jnp.float32))  # (Bt, C)

    # Scale: multiply straight from the input ref; f32 math only when x is f32.
    x = x_ref[...]
    gate = s if x.dtype == jnp.float32 else s.astype(x.dtype)
    o_ref[...] = (x * gate[:, :, None]).astype(o_ref.dtype)


def _se_pool_kernel(x_ref, ysum_ref, *, hw_total, hw_tile):
    # x_ref: (1, C, hw_tile); ysum_ref: (1, C, 1) f32 accumulator (resident over t).
    t = pl.program_id(1)

    @pl.when(t == 0)
    def _():
        ysum_ref[...] = jnp.zeros_like(ysum_ref)

    x = x_ref[...].astype(jnp.float32)
    # Mask padded lanes of a (possibly partial) last HW tile: OOB loads are junk.
    lane = jax.lax.broadcasted_iota(jnp.int32, x.shape, 2)
    valid = (t * hw_tile + lane) < hw_total
    x = jnp.where(valid, x, 0.0)
    ysum_ref[...] += jnp.sum(x, axis=-1, keepdims=True)


def _se_scale_kernel(ysum_ref, w1t_ref, w2t_ref, x_ref, o_ref, *, hw_total):
    # Recompute the (tiny) excitation from the pooled sums each step, then scale
    # one (1, C, hw_tile) tile. Partial last tiles need no masking: out-of-bounds
    # lanes of the output block are discarded on writeback.
    y = ysum_ref[...][:, :, 0] * (1.0 / float(hw_total))                      # (1, C)
    h = jnp.maximum(jnp.dot(y, w1t_ref[...], preferred_element_type=jnp.float32), 0.0)
    s = jax.nn.sigmoid(jnp.dot(h, w2t_ref[...], preferred_element_type=jnp.float32))  # (1, C)
    x = x_ref[...]
    gate = s if x.dtype == jnp.float32 else s.astype(x.dtype)
    o_ref[...] = (x * gate[:, :, None]).astype(o_ref.dtype)


# --------------------------------------------------------------------------- #
# Sizing helpers
# --------------------------------------------------------------------------- #
def _round_up(a, m):
    return ((a + m - 1) // m) * m


def _vmem_capacity_bytes():
    try:
        info = pltpu.get_tpu_info()
        cap = getattr(info, "vmem_capacity_bytes", None)
        if cap:
            return int(cap)
    except Exception:
        pass
    return 128 * 1024 * 1024  # v5e/v6e default


def _choose_bt(B, bytes_per_elem, block_budget, multi_tc):
    """Largest batch-tile fitting the budget; on multi-TC chips prefer even >=2 (ideally >=4) grid steps."""
    bt_cap = max(1, block_budget // max(1, bytes_per_elem))
    divisors = [d for d in range(1, B + 1) if B % d == 0]
    fitting = [d for d in divisors if d <= bt_cap] or [1]
    if not multi_tc:
        return max(fitting)  # single TensorCore: maximize tile, minimize step overhead
    even4 = [d for d in fitting if (B // d) >= 4 and (B // d) % 2 == 0]
    even2 = [d for d in fitting if (B // d) >= 2 and (B // d) % 2 == 0]
    any2 = [d for d in fitting if (B // d) >= 2]
    for cands in (even4, even2, any2):
        if cands:
            return max(cands)
    return max(fitting)


def _choose_hw_tile(HW, block_budget, per_lane_bytes, multi_tc, force_hw_tile):
    if force_hw_tile is not None:
        return int(force_hw_tile)
    hw_cap = max(128, ((block_budget // max(1, per_lane_bytes)) // 128) * 128)
    if multi_tc:
        # Smallest even tile count that fits the budget -> balanced across both TCs.
        n = 2
        while _round_up(pl.cdiv(HW, n), 128) > hw_cap:
            n += 2
        return _round_up(pl.cdiv(HW, n), 128)
    return min(hw_cap, _round_up(HW, 128))


# --------------------------------------------------------------------------- #
# Wrapper
# --------------------------------------------------------------------------- #
def se_block(x, w1, w2, *, vmem_limit_bytes=None, force_two_pass=False, force_hw_tile=None):
    """x: (B, C, H, W); w1: (C//r, C); w2: (C, C//r). Returns (B, C, H, W)."""
    B, C, H, W = x.shape
    HW = H * W
    C_red = w1.shape[0]
    itemsize = int(jnp.dtype(x.dtype).itemsize)

    vmem_cap = _vmem_capacity_bytes()
    multi_tc = vmem_cap <= 64 * 1024 * 1024  # v7x proxy: 64 MiB per-TC VMEM, 2 TCs/chip
    if vmem_limit_bytes is None:
        # ~96 MiB on 128 MiB chips (v5e/v6e), ~48 MiB on v7x -> headroom for 2-deep pipelining.
        vmem_limit_bytes = min(96 * 1024 * 1024, (3 * vmem_cap) // 4)
    block_budget = (3 * vmem_limit_bytes) // 4  # leave room for weights / scratch

    x_flat = x.reshape(B, C, HW)
    # Pre-transpose loop-invariant weights once (no in-kernel XLU transposes / casts).
    w1t = jnp.transpose(w1)  # (C, C_red)
    w2t = jnp.transpose(w2)  # (C_red, C)
    w_bytes = (C * C_red + C_red * C) * int(jnp.dtype(w1.dtype).itemsize)

    # in + out, double-buffered, in x's dtype, plus modest f32 headroom for per-vreg temps.
    bytes_per_elem = (4 * itemsize + 4) * C * HW
    fused_fits = bytes_per_elem <= block_budget
    split_small_batch = multi_tc and B == 1 and HW >= 256
    use_two_pass = force_two_pass or (not fused_fits) or split_small_batch

    if not use_two_pass:
        # ---------------- Fused single-read path ----------------
        Bt = _choose_bt(B, bytes_per_elem, block_budget, multi_tc)
        grid = (B // Bt,)
        cost = pl.CostEstimate(
            flops=2 * B * C * HW + 4 * B * C * C_red,
            transcendentals=B * C,
            bytes_accessed=2 * B * C * HW * itemsize + w_bytes,
        )
        out_flat = pl.pallas_call(
            _se_fused_kernel,
            out_shape=jax.ShapeDtypeStruct((B, C, HW), x.dtype),
            grid_spec=pltpu.PrefetchScalarGridSpec(
                num_scalar_prefetch=0,
                grid=grid,
                in_specs=[
                    pl.BlockSpec((Bt, C, HW), lambda b: (b, 0, 0)),
                    pl.BlockSpec((C, C_red), lambda b: (0, 0)),
                    pl.BlockSpec((C_red, C), lambda b: (0, 0)),
                ],
                out_specs=pl.BlockSpec((Bt, C, HW), lambda b: (b, 0, 0)),
            ),
            compiler_params=pltpu.CompilerParams(
                dimension_semantics=("parallel",),
                vmem_limit_bytes=vmem_limit_bytes,
            ),
            cost_estimate=cost,
        )(x_flat, w1t, w2t)
        return out_flat.reshape(B, C, H, W)

    # ---------------- Two-pass fallback (tiled pool + tiled scale) ----------------
    per_lane_bytes = (4 * itemsize + 4) * C
    hw_tile = _choose_hw_tile(HW, block_budget, per_lane_bytes, multi_tc, force_hw_tile)
    n_t = pl.cdiv(HW, hw_tile)

    # Pass 1: tiled partial-sum global pool -> (B, C, 1) f32.
    ysum = pl.pallas_call(
        functools.partial(_se_pool_kernel, hw_total=HW, hw_tile=hw_tile),
        out_shape=jax.ShapeDtypeStruct((B, C, 1), jnp.float32),
        grid_spec=pltpu.PrefetchScalarGridSpec(
            num_scalar_prefetch=0,
            grid=(B, n_t),
            in_specs=[pl.BlockSpec((1, C, hw_tile), lambda b, t: (b, 0, t))],
            out_specs=pl.BlockSpec((1, C, 1), lambda b, t: (b, 0, 0)),
        ),
        compiler_params=pltpu.CompilerParams(
            dimension_semantics=("parallel", "arbitrary"),
            vmem_limit_bytes=vmem_limit_bytes,
        ),
        cost_estimate=pl.CostEstimate(
            flops=B * C * HW,
            transcendentals=0,
            bytes_accessed=B * C * HW * itemsize + B * C * 4,
        ),
    )(x_flat)

    # Pass 2: tiled excitation + scale (excitation is tiny; recomputed per tile).
    out_flat = pl.pallas_call(
        functools.partial(_se_scale_kernel, hw_total=HW),
        out_shape=jax.ShapeDtypeStruct((B, C, HW), x.dtype),
        grid_spec=pltpu.PrefetchScalarGridSpec(
            num_scalar_prefetch=0,
            grid=(B, n_t),
            in_specs=[
                pl.BlockSpec((1, C, 1), lambda b, t: (b, 0, 0)),
                pl.BlockSpec((C, C_red), lambda b, t: (0, 0)),
                pl.BlockSpec((C_red, C), lambda b, t: (0, 0)),
                pl.BlockSpec((1, C, hw_tile), lambda b, t: (b, 0, t)),
            ],
            out_specs=pl.BlockSpec((1, C, hw_tile), lambda b, t: (b, 0, t)),
        ),
        compiler_params=pltpu.CompilerParams(
            dimension_semantics=("parallel", "parallel"),
            vmem_limit_bytes=vmem_limit_bytes,
        ),
        cost_estimate=pl.CostEstimate(
            flops=B * C * HW + 4 * B * C * C_red * n_t,
            transcendentals=B * C * n_t,
            bytes_accessed=2 * B * C * HW * itemsize + B * C * 4 + w_bytes,
        ),
    )(ysum, w1t, w2t, x_flat)

    return out_flat.reshape(B, C, H, W)


# --------------------------------------------------------------------------- #
# Reference + test
# --------------------------------------------------------------------------- #
def _xavier_uniform(key, shape):
    # Matches torch.nn.init.xavier_uniform_ semantics for a Linear weight (out, in).
    fan_out, fan_in = shape
    limit = (6.0 / (fan_in + fan_out)) ** 0.5
    return jax.random.uniform(key, shape, jnp.float32, minval=-limit, maxval=limit)


def se_block_ref(x, w1, w2):
    # Pure-JAX reference for correctness checking.
    y = jnp.mean(x, axis=(2, 3))                 # (B, C)
    h = jnp.maximum(y @ w1.T, 0.0)               # (B, C//r)
    s = jax.nn.sigmoid(h @ w2.T)                 # (B, C)
    return x * s[:, :, None, None]


if __name__ == "__main__":
    key = jax.random.PRNGKey(0)
    k_x, k_w1, k_w2, k_x2 = jax.random.split(key, 4)

    B, C, H, W = 2, 4, 16, 16
    reduction = 4
    C_red = max(1, C // reduction)

    x = jax.random.normal(k_x, (B, C, H, W), jnp.float32)
    w1 = _xavier_uniform(k_w1, (C_red, C))   # nn.Linear(C, C//r, bias=False).weight
    w2 = _xavier_uniform(k_w2, (C, C_red))   # nn.Linear(C//r, C, bias=False).weight

    # Fused single-read path.
    ref = se_block_ref(x, w1, w2)
    out = jax.block_until_ready(se_block(x, w1, w2))
    assert out.shape == (B, C, H, W)
    assert jnp.allclose(out, ref, atol=1e-5, rtol=1e-5), "fused path mismatch vs reference"

    # Two-pass fallback path: multi-tile HW axis including a masked partial last tile.
    H2 = W2 = 13  # HW = 169, not a multiple of the forced 128-wide tile
    x2 = jax.random.normal(k_x2, (B, C, H2, W2), jnp.float32)
    ref2 = se_block_ref(x2, w1, w2)
    out2 = jax.block_until_ready(
        se_block(x2, w1, w2, force_two_pass=True, force_hw_tile=128))
    assert out2.shape == (B, C, H2, W2)
    assert jnp.allclose(out2, ref2, atol=1e-5, rtol=1e-5), "two-pass path mismatch vs reference"

    print("KERNEL_OK")
</pallas_src>

<mosaic_0001>
module attributes {stable_mosaic.version = 11 : i64} {
  func.func @_se_fused_kernel(%arg0: i32, %arg1: memref<2x4x256xf32, #tpu.memory_space<vmem>>, %arg2: memref<4x1xf32, #tpu.memory_space<vmem>>, %arg3: memref<1x4xf32, #tpu.memory_space<vmem>>, %arg4: memref<2x4x256xf32, #tpu.memory_space<vmem>>) attributes {dimension_semantics = [#tpu.dimension_semantics<parallel>], iteration_bounds = array<i64: 1>, scalar_prefetch = 0 : i64, scratch_operands = 0 : i64, tpu.core_type = #tpu.core_type<tc>, window_params = [{transform_indices = @transform_0, window_bounds = array<i64: 2, 4, 256>}, {pipeline_mode = #tpu.pipeline_mode<synchronous>, transform_indices = @transform_1, window_bounds = array<i64: 4, 1>}, {pipeline_mode = #tpu.pipeline_mode<synchronous>, transform_indices = @transform_2, window_bounds = array<i64: 1, 4>}, {transform_indices = @transform_3, window_bounds = array<i64: 2, 4, 256>}]} {
    %c0 = arith.constant 0 : index
    %c0_0 = arith.constant 0 : index
    %c0_1 = arith.constant 0 : index
    %0 = vector.load %arg1[%c0, %c0_0, %c0_1] : memref<2x4x256xf32, #tpu.memory_space<vmem>>, vector<2x4x256xf32>
    %cst = arith.constant dense<0.000000e+00> : vector<2x4xf32>
    %1 = vector.multi_reduction <add>, %0, %cst [2] : vector<2x4x256xf32> to vector<2x4xf32>
    %cst_2 = arith.constant 3.906250e-03 : f32
    %2 = vector.broadcast %cst_2 : f32 to vector<2x4xf32>
    %3 = arith.mulf %1, %2 : vector<2x4xf32>
    %c0_3 = arith.constant 0 : index
    %c0_4 = arith.constant 0 : index
    %4 = vector.load %arg2[%c0_3, %c0_4] : memref<4x1xf32, #tpu.memory_space<vmem>>, vector<4x1xf32>
    %cst_5 = arith.constant dense<0.000000e+00> : vector<2x1xf32>
    %5 = tpu.matmul %3, %4, %cst_5 {dimension_numbers = #tpu.dot_dimension_numbers<[1], [0], [0], [1], [0, 0, 1, 1], [], []>} : vector<2x4xf32>, vector<4x1xf32>, vector<2x1xf32> -> vector<2x1xf32>
    %cst_6 = arith.constant 0.000000e+00 : f32
    %6 = vector.broadcast %cst_6 : f32 to vector<2x1xf32>
    %7 = arith.maximumf %5, %6 : vector<2x1xf32>
    %c0_7 = arith.constant 0 : index
    %c0_8 = arith.constant 0 : index
    %8 = vector.load %arg3[%c0_7, %c0_8] : memref<1x4xf32, #tpu.memory_space<vmem>>, vector<1x4xf32>
    %cst_9 = arith.constant dense<0.000000e+00> : vector<2x4xf32>
    %9 = tpu.matmul %7, %8, %cst_9 {dimension_numbers = #tpu.dot_dimension_numbers<[1], [0], [0], [1], [0, 0, 1, 1], [], []>} : vector<2x1xf32>, vector<1x4xf32>, vector<2x4xf32> -> vector<2x4xf32>
    %10 = arith.negf %9 : vector<2x4xf32>
    %11 = math.exp %10 : vector<2x4xf32>
    %cst_10 = arith.constant 1.000000e+00 : f32
    %12 = vector.broadcast %cst_10 : f32 to vector<2x4xf32>
    %13 = arith.addf %12, %11 : vector<2x4xf32>
    %14 = arith.divf %12, %13 : vector<2x4xf32>
    %c0_11 = arith.constant 0 : index
    %c0_12 = arith.constant 0 : index
    %c0_13 = arith.constant 0 : index
    %15 = vector.load %arg1[%c0_11, %c0_12, %c0_13] : memref<2x4x256xf32, #tpu.memory_space<vmem>>, vector<2x4x256xf32>
    %16 = vector.shape_cast %14 : vector<2x4xf32> to vector<2x4x1xf32>
    %17 = vector.broadcast %16 : vector<2x4x1xf32> to vector<2x4x256xf32>
    %18 = arith.mulf %15, %17 : vector<2x4x256xf32>
    %c0_14 = arith.constant 0 : index
    %c0_15 = arith.constant 0 : index
    %c0_16 = arith.constant 0 : index
    %19 = vector.load %arg4[%c0_14, %c0_15, %c0_16] : memref<2x4x256xf32, #tpu.memory_space<vmem>>, vector<2x4x256xf32>
    tpu.vector_store %arg4[%c0_14, %c0_15, %c0_16], %18 {strides = array<i32>} : memref<2x4x256xf32, #tpu.memory_space<vmem>>, vector<2x4x256xf32>,
    return
  }
  func.func @transform_0(%arg0: i32) -> (i32, i32, i32) {
    %c0_i32 = arith.constant 0 : i32
    %c0_i32_0 = arith.constant 0 : i32
    %c0_i32_1 = arith.constant 0 : i32
    return %arg0, %c0_i32, %c0_i32_0 : i32, i32, i32
  }
  func.func @transform_1(%arg0: i32) -> (i32, i32) {
    %c0_i32 = arith.constant 0 : i32
    %c0_i32_0 = arith.constant 0 : i32
    %c0_i32_1 = arith.constant 0 : i32
    return %c0_i32, %c0_i32_0 : i32, i32
  }
  func.func @transform_2(%arg0: i32) -> (i32, i32) {
    %c0_i32 = arith.constant 0 : i32
    %c0_i32_0 = arith.constant 0 : i32
    %c0_i32_1 = arith.constant 0 : i32
    return %c0_i32, %c0_i32_0 : i32, i32
  }
  func.func @transform_3(%arg0: i32) -> (i32, i32, i32) {
    %c0_i32 = arith.constant 0 : i32
    %c0_i32_0 = arith.constant 0 : i32
    %c0_i32_1 = arith.constant 0 : i32
    return %arg0, %c0_i32, %c0_i32_0 : i32, i32, i32
  }
}

</mosaic_0001>

<llo_original>
// kernel: tpu_custom_call.1
$region0: #{tpu_custom_call.1}
  #allocation0 [shape = 'u32[]', space=smem, size = 0x4, offset = 0x4, fixed_abs, tag = 'smem constant byte address 0x4 - core index']
  #allocation1 [shape = 'u32[144,128]{1,0:T(1,128)}', space=vmem, size = 0x12000, scoped, tag = 'internal scratch']
  %s0 = inlined_call_operand.hbm [shape: f32[2,4,256], index: 0, kind: input, shape index: {}]
  %s1 = inlined_call_operand.hbm [shape: f32[4,1], index: 1, kind: input, shape index: {}]
  %s2 = inlined_call_operand.hbm [shape: f32[1,4], index: 2, kind: input, shape index: {}]
  %s3 = inlined_call_operand.hbm [shape: f32[2,4,256], index: 3, kind: output, shape index: {}]
  %s4 = sld [smem:[#allocation0]]
  $region34: #{tpu_custom_call.1} parent=0
    _
  %s6 = ssub.s32 1, %s4
  %s7 = scalar_select 0, %s6, %s4
  $region1: #{tpu_custom_call.1} parent=0
    #allocation2 [shape = 'u8[8192]{0}', space=vmem, size = 0x2000, scoped, tag = 'input window, operand 0, single buffered']
    #allocation3 [shape = 's32[1]{0}', space=sflag, size = 0x4, scoped, tag = 'scoped memory for tpu_custom_call.1']
    #allocation4 [shape = 's32[1]{0}', space=sflag, size = 0x4, scoped, tag = 'scoped memory for tpu_custom_call.1']
    #allocation5 [shape = 'u8[2048]{0}', space=vmem, size = 0x800, scoped, tag = 'input window, operand 1, single buffered']
    #allocation6 [shape = 's32[1]{0}', space=sflag, size = 0x4, scoped, tag = 'scoped memory for tpu_custom_call.1']
    #allocation7 [shape = 'u8[512]{0}', space=vmem, size = 0x400, scoped, tag = 'input window, operand 2, single buffered']
    #allocation8 [shape = 'u8[8192]{0}', space=vmem, size = 0x2000, scoped, tag = 'output window, operand 0, single buffered']
    %8 = vsyncpa [#allocation3], 0
    %9 = vsyncpa [#allocation6], 0
    %10 = vsyncpa [#allocation4], 0
    // Predicated region
    $region2: #{tpu_custom_call.1} parent=1 // pred_check
      _
    $region3: #{tpu_custom_call.1} parent=1 // pred_check_branch
      %12 = sbr.rel (0) target = $region5
    $region4: #{tpu_custom_call.1} parent=1 // pred_region
      %s14 = ssub.s32 256, 256
      %15 = vsyncadd [#allocation3], %s14
      %s16 = sshll.u32 [#allocation2], 4
      %s17 = int_to_ptr.vmem [resolvable:$true] %s16
      %22 = dma.hbm_to_vmem [thread:$0]  %s0, 256, %s17, [#allocation3], 128, 128, 8
    $region5: #{tpu_custom_call.1} parent=1 // pred_fallthru
      _
    // Predicated region
    $region6: #{tpu_custom_call.1} parent=1 // pred_check
      _
    $region7: #{tpu_custom_call.1} parent=1 // pred_check_branch
      %24 = sbr.rel (0) target = $region9
    $region8: #{tpu_custom_call.1} parent=1 // pred_region
      %s26 = ssub.s32 64, 64
      %27 = vsyncadd [#allocation6], %s26
      %s29 = sshll.u32 [#allocation5], 4
      %s30 = int_to_ptr.vmem [resolvable:$true] %s29
      %32 = dma.hbm_to_vmem [thread:$0]  %s1, 64, %s30, [#allocation6]
    $region9: #{tpu_custom_call.1} parent=1 // pred_fallthru
      _
    // Predicated region
    $region10: #{tpu_custom_call.1} parent=1 // pred_check
      _
    $region11: #{tpu_custom_call.1} parent=1 // pred_check_branch
      %34 = sbr.rel (0) target = $region13
    $region12: #{tpu_custom_call.1} parent=1 // pred_region
      %s36 = ssub.s32 16, 16
      %37 = vsyncadd [#allocation6], %s36
      %s39 = sshll.u32 [#allocation7], 4
      %s40 = int_to_ptr.vmem [resolvable:$true] %s39
      %42 = dma.hbm_to_vmem [thread:$0]  %s2, 16, %s40, [#allocation6]
    $region13: #{tpu_custom_call.1} parent=1 // pred_fallthru
      _
    // Predicated region
    $region14: #{tpu_custom_call.1} parent=1 // pred_check
      _
    $region15: #{tpu_custom_call.1} parent=1 // pred_check_branch
      %44 = sbr.rel (0) target = $region17
    $region16: #{tpu_custom_call.1} parent=1 // pred_region
      %45 = dma.done [#allocation3], 256
    $region17: #{tpu_custom_call.1} parent=1 // pred_fallthru
      _
    // Predicated region
    $region18: #{tpu_custom_call.1} parent=1 // pred_check
      _
    $region19: #{tpu_custom_call.1} parent=1 // pred_check_branch
      %47 = sbr.rel (0) target = $region21
    $region20: #{tpu_custom_call.1} parent=1 // pred_region
      %48 = dma.done [#allocation6], 64
    $region21: #{tpu_custom_call.1} parent=1 // pred_fallthru
      _
    // Predicated region
    $region22: #{tpu_custom_call.1} parent=1 // pred_check
      _
    $region23: #{tpu_custom_call.1} parent=1 // pred_check_branch
      %50 = sbr.rel (0) target = $region25
    $region24: #{tpu_custom_call.1} parent=1 // pred_region
      %51 = dma.done [#allocation6], 16
    $region25: #{tpu_custom_call.1} parent=1 // pred_fallthru
      _
    %v52 = vld [vmem:[#allocation2] sm:$0xff]
    %v53 = vld [vmem:[#allocation2 + $0x8] sm:$0xff]
    %v56 = vcombine.high %v52, %v52
    %v57 = vcombine.high %v53, %v53
    %vm60 = vcmask 1043456
    %v61 = vsel %vm60, %v52, 0.0
    %v62 = vsel %vm60, %v56, 0.0
    %v63 = vadd.f32 %v61, %v62
    %64 = vadd.xlane.f32.xlu0 %v63
    %v65 = vpop.xlane.xlu0 %64
    %v66 = vsel %vm60, %v53, 0.0
    %v67 = vsel %vm60, %v57, 0.0
    %v68 = vadd.f32 %v66, %v67
    %69 = vadd.xlane.f32.xlu0 %v68
    %v70 = vpop.xlane.xlu0 %69
    %v71 = vmul.f32 %v65, 0.00390625
    %v72 = vmul.f32 %v70, 0.00390625
    %v73 = vld [vmem:[#allocation5] sm:$0xf]
    %v76 = vlaneseq
    %v77 = vand.u32 %v76, 127
    %v78 = vlaneseq
    %v79 = vshrl.u32 %v78, 7
    %v80 = vsub.s32 %v77, %v79
    %v81 = vrot.slane %v71, %v80
    %v82 = vlaneseq
    %v83 = vshrl.u32 %v82, 7
    %v84 = vsub.s32 %v77, %v83
    %v85 = vrot.slane %v72, %v84
    %vm86 = vcmask 1041409
    %v87 = vsel %vm86, %v85, %v81
    %vm88 = vcmask 31744
    %v89 = vsel %vm88, %v87, 0
    %v92 = vsel %vm60, %v73, 0
    %94 = vmatprep.subr.mxu0 0.0
    %95 = vmatpush1.msra.mxu0 %v92
    %96 = vmatprep.subr.mxu0 0.0
    %97 = vmatpush1.msra.mxu0 0.0
    %98 = vmatprep.subr.mxu0 0.0
    %99 = vmatpush1.msra.mxu0 0.0
    %100 = vmatprep.subr.mxu0 0.0
    %101 = vmatpush1.msra.mxu0 0.0
    %102 = vmatprep.subr.mxu0 0.0
    %103 = vmatpush1.msra.mxu0 0.0
    %104 = vmatprep.subr.mxu0 0.0
    %105 = vmatpush1.msra.mxu0 0.0
    %106 = vmatprep.subr.mxu0 0.0
    %107 = vmatpush1.msra.mxu0 0.0
    %108 = vmatprep.subr.mxu0 0.0
    %109 = vmatpush1.msra.mxu0 0.0
    %110 = vmatprep.subr.mxu0 0.0
    %111 = vmatpush1.msra.mxu0 0.0
    %112 = vmatprep.subr.mxu0 0.0
    %113 = vmatpush1.msra.mxu0 0.0
    %114 = vmatprep.subr.mxu0 0.0
    %115 = vmatpush1.msra.mxu0 0.0
    %116 = vmatprep.subr.mxu0 0.0
    %117 = vmatpush1.msra.mxu0 0.0
    %118 = vmatprep.subr.mxu0 0.0
    %119 = vmatpush1.msra.mxu0 0.0
    %120 = vmatprep.subr.mxu0 0.0
    %121 = vmatpush1.msra.mxu0 0.0
    %122 = vmatprep.subr.mxu0 0.0
    %123 = vmatpush1.msra.mxu0 0.0
    %124 = vmatprep.subr.mxu0 0.0
    %125 = vmatpush1.msra.mxu0 0.0
    %126 = vmatprep.subr.mxu0 0.0
    %127 = vmatpush1.msra.mxu0 0.0
    %128 = vmatprep.subr.mxu0 0.0
    %129 = vmatpush1.msra.mxu0 0.0
    %130 = vmatprep.subr.mxu0 0.0
    %131 = vmatpush1.msra.mxu0 0.0
    %132 = vmatprep.subr.mxu0 0.0
    %133 = vmatpush1.msra.mxu0 0.0
    %134 = vmatprep.subr.mxu0 0.0
    %135 = vmatpush1.msra.mxu0 0.0
    %136 = vmatprep.subr.mxu0 0.0
    %137 = vmatpush1.msra.mxu0 0.0
    %138 = vmatprep.subr.mxu0 0.0
    %139 = vmatpush1.msra.mxu0 0.0
    %140 = vmatprep.subr.mxu0 0.0
    %141 = vmatpush1.msra.mxu0 0.0
    %142 = vmatprep.subr.mxu0 0.0
    %143 = vmatpush1.msra.mxu0 0.0
    %144 = vmatprep.subr.mxu0 0.0
    %145 = vmatpush1.msra.mxu0 0.0
    %146 = vmatprep.subr.mxu0 0.0
    %147 = vmatpush1.msra.mxu0 0.0
    %148 = vmatprep.subr.mxu0 0.0
    %149 = vmatpush1.msra.mxu0 0.0
    %150 = vmatprep.subr.mxu0 0.0
    %151 = vmatpush1.msra.mxu0 0.0
    %152 = vmatprep.subr.mxu0 0.0
    %153 = vmatpush1.msra.mxu0 0.0
    %154 = vmatprep.subr.mxu0 0.0
    %155 = vmatpush1.msra.mxu0 0.0
    %156 = vmatprep.subr.mxu0 0.0
    %157 = vmatpush1.msra.mxu0 0.0
    %158 = vmatprep.mubr.f32.mxu0 0.0
    %159 = vmatmul.mubr.f32.gmra.mrb[0].mxu0 %v89
    %v160 = vpop.f32.mrb[0].mxu0
    %v161 = vadd.f32 0.0, %v160
    %v162 = vpop.f32.mrb[0].mxu0
    %163 = vdwg.mxu0
    %v164 = vmax.f32 %v161, 0.0
    %v165 = vld [vmem:[#allocation7] sm:$0x1]
    %vm166 = vcmask 7168
    %v168 = vsel %vm166, %v164, 0
    %vm170 = vcmask 1040384
    %v172 = vsel %vm170, %v165, 0
    %174 = vmatprep.subr.mxu0 0.0
    %175 = vmatpush1.msra.mxu0 %v172
    %176 = vmatprep.subr.mxu0 0.0
    %177 = vmatpush1.msra.mxu0 0.0
    %178 = vmatprep.subr.mxu0 0.0
    %179 = vmatpush1.msra.mxu0 0.0
    %180 = vmatprep.subr.mxu0 0.0
    %181 = vmatpush1.msra.mxu0 0.0
    %182 = vmatprep.subr.mxu0 0.0
    %183 = vmatpush1.msra.mxu0 0.0
    %184 = vmatprep.subr.mxu0 0.0
    %185 = vmatpush1.msra.mxu0 0.0
    %186 = vmatprep.subr.mxu0 0.0
    %187 = vmatpush1.msra.mxu0 0.0
    %188 = vmatprep.subr.mxu0 0.0
    %189 = vmatpush1.msra.mxu0 0.0
    %190 = vmatprep.subr.mxu0 0.0
    %191 = vmatpush1.msra.mxu0 0.0
    %192 = vmatprep.subr.mxu0 0.0
    %193 = vmatpush1.msra.mxu0 0.0
    %194 = vmatprep.subr.mxu0 0.0
    %195 = vmatpush1.msra.mxu0 0.0
    %196 = vmatprep.subr.mxu0 0.0
    %197 = vmatpush1.msra.mxu0 0.0
    %198 = vmatprep.subr.mxu0 0.0
    %199 = vmatpush1.msra.mxu0 0.0
    %200 = vmatprep.subr.mxu0 0.0
    %201 = vmatpush1.msra.mxu0 0.0
    %202 = vmatprep.subr.mxu0 0.0
    %203 = vmatpush1.msra.mxu0 0.0
    %204 = vmatprep.subr.mxu0 0.0
    %205 = vmatpush1.msra.mxu0 0.0
    %206 = vmatprep.subr.mxu0 0.0
    %207 = vmatpush1.msra.mxu0 0.0
    %208 = vmatprep.subr.mxu0 0.0
    %209 = vmatpush1.msra.mxu0 0.0
    %210 = vmatprep.subr.mxu0 0.0
    %211 = vmatpush1.msra.mxu0 0.0
    %212 = vmatprep.subr.mxu0 0.0
    %213 = vmatpush1.msra.mxu0 0.0
    %214 = vmatprep.subr.mxu0 0.0
    %215 = vmatpush1.msra.mxu0 0.0
    %216 = vmatprep.subr.mxu0 0.0
    %217 = vmatpush1.msra.mxu0 0.0
    %218 = vmatprep.subr.mxu0 0.0
    %219 = vmatpush1.msra.mxu0 0.0
    %220 = vmatprep.subr.mxu0 0.0
    %221 = vmatpush1.msra.mxu0 0.0
    %222 = vmatprep.subr.mxu0 0.0
    %223 = vmatpush1.msra.mxu0 0.0
    %224 = vmatprep.subr.mxu0 0.0
    %225 = vmatpush1.msra.mxu0 0.0
    %226 = vmatprep.subr.mxu0 0.0
    %227 = vmatpush1.msra.mxu0 0.0
    %228 = vmatprep.subr.mxu0 0.0
    %229 = vmatpush1.msra.mxu0 0.0
    %230 = vmatprep.subr.mxu0 0.0
    %231 = vmatpush1.msra.mxu0 0.0
    %232 = vmatprep.subr.mxu0 0.0
    %233 = vmatpush1.msra.mxu0 0.0
    %234 = vmatprep.subr.mxu0 0.0
    %235 = vmatpush1.msra.mxu0 0.0
    %236 = vmatprep.subr.mxu0 0.0
    %237 = vmatpush1.msra.mxu0 0.0
    %238 = vmatprep.mubr.f32.mxu0 0.0
    %239 = vmatmul.mubr.f32.gmra.mrb[0].mxu0 %v168
    %v240 = vpop.f32.mrb[0].mxu0
    %v241 = vadd.f32 0.0, %v240
    %v242 = vpop.f32.mrb[0].mxu0
    %243 = vdwg.mxu0
    %v244 = vxor.u32 %v241, 2147483648
    %v245 = vmul.f32 %v244, 1.442695
    %v246 = vpow.pop %v245
    %v247 = vadd.f32 %v246, 1.0
    %v248 = vrcp.pop %v247
    %v249 = vmul.f32 1.0, %v248
    %v250 = vlaneseq
    %v251 = vshrl.u32 %v250, 7
    %v252 = vsub.s32 0, %v251
    %v253 = vrot.slane %v249, %v252
    %255 = vbcast.lane.b32.xlu0 %v253, 256
    %v256 = vpop.permute.xlu0 %255
    %v257 = vlaneseq
    %v258 = vshrl.u32 %v257, 7
    %v259 = vsub.s32 1, %v258
    %v260 = vrot.slane %v249, %v259
    %262 = vbcast.lane.b32.xlu0 %v260, 256
    %v263 = vpop.permute.xlu0 %262
    %v267 = vunpack.c.l.s4 839922192
    %v268 = vunpack.c.0.s8 %v267
    %v269 = vlaneseq
    %v270 = vshrl.u32 %v269, 7
    %v271 = vsub.s32 %v268, %v270
    %v272 = vrot.slane %v256, %v271
    %v274 = vunpack.c.l.s4 839922192
    %v275 = vunpack.c.0.s8 %v274
    %v276 = vlaneseq
    %v277 = vshrl.u32 %v276, 7
    %v278 = vsub.s32 %v275, %v277
    %v279 = vrot.slane %v263, %v278
    %v282 = vmul.f32 %v52, %v272
    %v283 = vmul.f32 %v53, %v279
    %284 = vst [vmem:[#allocation8] sm:$0xff] %v282
    %285 = vst [vmem:[#allocation8 + $0x8] sm:$0xff] %v283
    // Predicated region
    $region26: #{tpu_custom_call.1} parent=1 // pred_check
      _
    $region27: #{tpu_custom_call.1} parent=1 // pred_check_branch
      %287 = sbr.rel (0) target = $region29
    $region28: #{tpu_custom_call.1} parent=1 // pred_region
      %s289 = ssub.s32 256, 256
      %290 = vsyncadd [#allocation4], %s289
      %s291 = sshll.u32 [#allocation8], 4
      %s292 = int_to_ptr.vmem [resolvable:$true] %s291
      %297 = dma.vmem_to_hbm [thread:$0]  %s292, 256, %s3, [#allocation4], 128, 128, 8
    $region29: #{tpu_custom_call.1} parent=1 // pred_fallthru
      _
    // Predicated region
    $region30: #{tpu_custom_call.1} parent=1 // pred_check
      _
    $region31: #{tpu_custom_call.1} parent=1 // pred_check_branch
      %299 = sbr.rel (0) target = $region33
    $region32: #{tpu_custom_call.1} parent=1 // pred_region
      %300 = dma.done [#allocation4], 256
    $region33: #{tpu_custom_call.1} parent=1 // pred_fallthru
      _
    %301 = vsyncpa [#allocation3], 1
    %302 = vsyncpa [#allocation6], 1
    %303 = vsyncpa [#allocation4], 1

</llo_original>
